<compile_context>
chip_gen: v6e
topology: v6e:2x2x1
jax: 0.10.0
libtpu: 0.0.40
codegen_flags: <defaults>
</compile_context>

<pallas_src>
import functools

import jax
import jax.numpy as jnp
import numpy as np
from jax.experimental import pallas as pl
from jax.experimental.pallas import tpu as pltpu


_DMA_DEPTH = 32              # row DMAs kept in flight per token block
_MAX_TOKENS_PER_BLOCK = 256


def _round_up(x, m):
    return (x + m - 1) // m * m


# --------------------------------------------------------------------------------------
# HBM-gather kernels (large tables): table stays in HBM, rows fetched by per-row DMA.
# --------------------------------------------------------------------------------------

def _embed_fp_hbm_kernel(ids_ref, w_hbm, o_ref, sems, *, tokens_per_block, depth):
    """Gather float32 rows straight from the HBM table into the (T, D) output block."""
    base = pl.program_id(0) * tokens_per_block
    n_sems = depth + 1

    def start(row, t):
        pltpu.make_async_copy(
            w_hbm.at[pl.ds(row, 1), :],          # (1, D) row in HBM
            o_ref.at[pl.ds(t, 1), :],            # lands directly in the output block
            sems.at[t % n_sems],
        ).start()

    def wait(t):
        pltpu.make_async_copy(
            w_hbm.at[pl.ds(0, 1), :],
            o_ref.at[pl.ds(t, 1), :],
            sems.at[t % n_sems],
        ).wait()

    @pl.loop(0, depth)
    def _prime(t):
        start(ids_ref[base + t], t)

    @pl.loop(0, tokens_per_block)
    def _gather(t):
        # Hoist the SMEM id read for row t+depth above the DMA wait.
        nxt_row = ids_ref[base + jnp.minimum(t + depth, tokens_per_block - 1)]
        wait(t)

        @pl.when(t + depth < tokens_per_block)
        def _():
            start(nxt_row, t + depth)


def _embed_quant_hbm_kernel(ids_ref, w_hbm, scale_ref, o_ref, rowbuf, sems, *,
                            tokens_per_block, depth):
    """Gather int8 rows; widen + dequantize each row exactly once into o_ref."""
    base = pl.program_id(0) * tokens_per_block
    n_slots = depth + 2          # slot reuse distance >= 2 iterations: WAR-safe

    def start(row, slot):
        pltpu.make_async_copy(
            w_hbm.at[pl.ds(row, 1), :], rowbuf.at[slot], sems.at[slot]).start()

    def wait(slot):
        pltpu.make_async_copy(
            w_hbm.at[pl.ds(0, 1), :], rowbuf.at[slot], sems.at[slot]).wait()

    @pl.loop(0, depth)
    def _prime(t):
        start(ids_ref[base + t], t % n_slots)

    @pl.loop(0, tokens_per_block)
    def _gather(t):
        # Hoist the SMEM id read above the wait.
        nxt_row = ids_ref[base + jnp.minimum(t + depth, tokens_per_block - 1)]
        slot = t % n_slots
        wait(slot)

        # Issue the follow-up DMA before consuming this slot; it targets a different
        # slot ((t+depth) % n_slots != slot), so there is no WAR hazard.
        @pl.when(t + depth < tokens_per_block)
        def _():
            start(nxt_row, (t + depth) % n_slots)

        # Single fused widen + dequant write of this output row.
        o_ref[pl.ds(t, 1), :] = (
            rowbuf[slot].astype(jnp.float32) * scale_ref[pl.ds(t, 1), :])


# --------------------------------------------------------------------------------------
# Resident-table kernels (small tables): whole table lives in VMEM, no per-row DMAs.
# --------------------------------------------------------------------------------------

def _embed_fp_resident_kernel(ids_ref, w_ref, o_ref, *, tokens_per_block):
    """Gather rows from a VMEM-resident f32 table with dynamic sublane slices (exact)."""
    base = pl.program_id(0) * tokens_per_block

    @pl.loop(0, tokens_per_block)
    def _(t):
        row = ids_ref[base + t]
        o_ref[pl.ds(t, 1), :] = w_ref[pl.ds(row, 1), :]


def _embed_quant_resident_kernel(ids_ref, w_ref, scale_ref, o_ref, *, vocab):
    """VMEM-resident int8 table: one-hot MXU row select, then per-token dequant.

    int8 values and the 0/1 selectors are exact in bf16, so the matmul selection is
    bit-exact at any MXU precision; the f32 scale is applied afterwards.
    """
    ids = ids_ref[...]                                         # (T, 1) int32
    iota = jax.lax.broadcasted_iota(jnp.int32, (ids.shape[0], vocab), 1)
    one_hot = (iota == ids).astype(jnp.float32)                # (T, V)
    rows = jnp.dot(one_hot, w_ref[...].astype(jnp.float32),
                   preferred_element_type=jnp.float32)         # exact row values
    o_ref[...] = rows * scale_ref[...]                         # (T, D) * (T, 1)


# --------------------------------------------------------------------------------------
# Wrapper
# --------------------------------------------------------------------------------------

def embedding_forward(x, weight, weight_scaler=None, *,
                      tokens_per_block=_MAX_TOKENS_PER_BLOCK,
                      force_hbm_gather=False):
    """Pallas embedding lookup.

    x:             integer array, any shape (e.g. (B, S))
    weight:        (V, D) float32 (quant=False)  or  (V, D) int8 (quant=True)
    weight_scaler: None            (quant=False)  or  (V,) float32 (quant=True)
    returns:       x.shape + (D,)
    """
    orig_shape = tuple(x.shape)
    vocab, dim = weight.shape
    quant = weight_scaler is not None
    out_dtype = jnp.float32 if quant else weight.dtype

    # Bounds safety: clamp ids so a bad token id can never drive an OOB access/DMA.
    ids = jnp.clip(x.reshape(-1).astype(jnp.int32), 0, vocab - 1)
    n_tok = int(ids.shape[0])

    # ---- VMEM budget derived from the chip (v7x has 64 MiB/core vs 128 on v5e/v6e) ----
    try:
        vmem_cap = int(pltpu.get_tpu_info().vmem_capacity_bytes)
    except Exception:
        vmem_cap = 64 * 1024 * 1024
    vmem_limit = int(min(vmem_cap // 2, 32 * 1024 * 1024))

    # ---- token block size: footprint ~ double-buffered (T, D) f32 output tile ----
    cap = max(8, (vmem_limit // (3 * 4 * dim)) // 8 * 8)
    t_blk = int(min(tokens_per_block, cap))
    # Keep >= 2 grid blocks whenever there is enough work (v7x dual TensorCore).
    half = _round_up(-(-n_tok // 2), 8)
    t_blk = max(8, (min(t_blk, half) // 8) * 8)

    n_pad = _round_up(max(n_tok, 1), t_blk)
    if n_pad != n_tok:
        ids = jnp.pad(ids, (0, n_pad - n_tok))        # pad with row 0 (valid)
    n_blocks = n_pad // t_blk
    depth = min(_DMA_DEPTH, t_blk)

    compiler_params = pltpu.CompilerParams(
        dimension_semantics=("parallel",),             # each output block written once
        vmem_limit_bytes=vmem_limit,
    )

    # ---- resident-table fast path for small tables ----
    table_f32_bytes = vocab * dim * 4
    onehot_bytes = t_blk * vocab * 4
    resident_budget = min(vmem_limit // 3, 8 * 1024 * 1024)
    use_resident = (not force_hbm_gather) and (
        table_f32_bytes + onehot_bytes <= resident_budget)

    if use_resident and not quant:
        kernel = functools.partial(_embed_fp_resident_kernel, tokens_per_block=t_blk)
        out = pl.pallas_call(
            kernel,
            out_shape=jax.ShapeDtypeStruct((n_pad, dim), out_dtype),
            grid_spec=pltpu.PrefetchScalarGridSpec(
                num_scalar_prefetch=1,                                   # ids in SMEM
                grid=(n_blocks,),
                in_specs=[pl.BlockSpec((vocab, dim), lambda i, ids_ref: (0, 0))],
                out_specs=pl.BlockSpec((t_blk, dim), lambda i, ids_ref: (i, 0)),
            ),
            compiler_params=compiler_params,
        )(ids, weight)

    elif use_resident and quant:
        scales = jnp.take(weight_scaler.astype(jnp.float32), ids, axis=0)
        scales = scales.reshape(n_pad, 1)
        ids2d = ids.reshape(n_pad, 1)
        kernel = functools.partial(_embed_quant_resident_kernel, vocab=vocab)
        out = pl.pallas_call(
            kernel,
            out_shape=jax.ShapeDtypeStruct((n_pad, dim), jnp.float32),
            grid_spec=pltpu.PrefetchScalarGridSpec(
                num_scalar_prefetch=0,
                grid=(n_blocks,),
                in_specs=[
                    pl.BlockSpec((t_blk, 1), lambda i: (i, 0)),          # token ids
                    pl.BlockSpec((vocab, dim), lambda i: (0, 0)),        # int8 table
                    pl.BlockSpec((t_blk, 1), lambda i: (i, 0)),          # per-token scales
                ],
                out_specs=pl.BlockSpec((t_blk, dim), lambda i: (i, 0)),
            ),
            compiler_params=compiler_params,
        )(ids2d, weight, scales)

    elif not quant:
        if jnp.dtype(weight.dtype).itemsize != 4:
            # TODO(synk): u32-repacked staging for bf16/fp8 tables on the HBM path.
            raise NotImplementedError("HBM-gather path requires a 32-bit weight dtype")
        kernel = functools.partial(_embed_fp_hbm_kernel,
                                   tokens_per_block=t_blk, depth=depth)
        out = pl.pallas_call(
            kernel,
            out_shape=jax.ShapeDtypeStruct((n_pad, dim), out_dtype),
            grid_spec=pltpu.PrefetchScalarGridSpec(
                num_scalar_prefetch=1,
                grid=(n_blocks,),
                in_specs=[pl.BlockSpec(memory_space=pl.ANY)],            # table in HBM
                out_specs=pl.BlockSpec((t_blk, dim), lambda i, ids_ref: (i, 0)),
                scratch_shapes=[pltpu.SemaphoreType.DMA((depth + 1,))],
            ),
            compiler_params=compiler_params,
        )(ids, weight)

    else:
        # Per-token scales gathered once in the wrapper (tiny), fed as a dense block.
        scales = jnp.take(weight_scaler.astype(jnp.float32), ids, axis=0)
        scales = scales.reshape(n_pad, 1)
        kernel = functools.partial(_embed_quant_hbm_kernel,
                                   tokens_per_block=t_blk, depth=depth)
        out = pl.pallas_call(
            kernel,
            out_shape=jax.ShapeDtypeStruct((n_pad, dim), jnp.float32),
            grid_spec=pltpu.PrefetchScalarGridSpec(
                num_scalar_prefetch=1,
                grid=(n_blocks,),
                in_specs=[
                    pl.BlockSpec(memory_space=pl.ANY),                       # int8 table
                    pl.BlockSpec((t_blk, 1), lambda i, ids_ref: (i, 0)),     # scales
                ],
                out_specs=pl.BlockSpec((t_blk, dim), lambda i, ids_ref: (i, 0)),
                scratch_shapes=[
                    pltpu.VMEM((depth + 2, 1, dim), weight.dtype),   # int8 row slots
                    pltpu.SemaphoreType.DMA((depth + 2,)),
                ],
            ),
            compiler_params=compiler_params,
        )(ids, weight, scales)

    if n_pad != n_tok:
        out = out[:n_tok]
    return out.reshape(orig_shape + (dim,))


if __name__ == "__main__":
    key = jax.random.PRNGKey(0)
    k_w, k_wq, k_s, k_x = jax.random.split(key, 4)

    num_embeddings = 64
    embedding_dim = 128   # lane-aligned
    batch, seq = 2, 8

    x = jax.random.randint(k_x, (batch, seq), 0, num_embeddings, dtype=jnp.int32)

    # ---- quant=False path ----
    weight_fp = jax.random.normal(
        k_w, (num_embeddings, embedding_dim), dtype=jnp.float32)
    ref_fp = jnp.take(weight_fp, x, axis=0)
    for force in (False, True):          # resident fast path and HBM-gather path
        out_fp = jax.block_until_ready(
            embedding_forward(x, weight_fp, force_hbm_gather=force))
        assert out_fp.shape == (batch, seq, embedding_dim)
        np.testing.assert_allclose(
            np.asarray(out_fp), np.asarray(ref_fp), rtol=1e-6, atol=1e-6)

    # ---- quant=True path ----
    weight_q = jax.random.randint(
        k_wq, (num_embeddings, embedding_dim), -128, 128, dtype=jnp.int32
    ).astype(jnp.int8)
    weight_scaler = jax.random.uniform(
        k_s, (num_embeddings,), dtype=jnp.float32, minval=0.01, maxval=0.1)
    ref_q = jnp.take(
        weight_q.astype(jnp.float32) * weight_scaler[:, None], x, axis=0)
    for force in (False, True):
        out_q = jax.block_until_ready(
            embedding_forward(x, weight_q, weight_scaler, force_hbm_gather=force))
        assert out_q.shape == (batch, seq, embedding_dim)
        np.testing.assert_allclose(
            np.asarray(out_q), np.asarray(ref_q), rtol=1e-6, atol=1e-6)

    print("KERNEL_OK")
</pallas_src>

<mosaic_0001>
module attributes {stable_mosaic.version = 11 : i64} {
  func.func @_embed_fp_resident_kernel(%arg0: i32, %arg1: memref<16xi32, #tpu.memory_space<smem>>, %arg2: memref<64x128xf32, #tpu.memory_space<vmem>>, %arg3: memref<8x128xf32, #tpu.memory_space<vmem>>) attributes {dimension_semantics = [#tpu.dimension_semantics<parallel>], iteration_bounds = array<i64: 2>, scalar_prefetch = 1 : i64, scratch_operands = 0 : i64, tpu.core_type = #tpu.core_type<tc>, window_params = [{pipeline_mode = #tpu.pipeline_mode<synchronous>, transform_indices = @transform_0, window_bounds = array<i64: 64, 128>}, {transform_indices = @transform_1, window_bounds = array<i64: 8, 128>}]} {
    %c8_i32 = arith.constant 8 : i32
    %0 = arith.muli %arg0, %c8_i32 : i32
    %c0_i32 = arith.constant 0 : i32
    %c8_i32_0 = arith.constant 8 : i32
    %1 = arith.addi %c0_i32, %c8_i32_0 : i32
    %c1_i32 = arith.constant 1 : i32
    scf.for %arg4 = %c0_i32 to %1 step %c1_i32  : i32 {
      %c1_i32_2 = arith.constant 1 : i32
      %2 = arith.muli %arg4, %c1_i32_2 : i32
      %c0_i32_3 = arith.constant 0 : i32
      %3 = arith.addi %c0_i32_3, %2 : i32
      %4 = arith.addi %0, %3 : i32
      %5 = arith.index_cast %4 : i32 to index
      %6 = memref.load %arg1[%5] : memref<16xi32, #tpu.memory_space<smem>>
      %7 = arith.index_cast %6 : i32 to index
      %c0 = arith.constant 0 : index
      %8 = vector.load %arg2[%7, %c0] : memref<64x128xf32, #tpu.memory_space<vmem>>, vector<1x128xf32>
      %9 = arith.index_cast %3 : i32 to index
      %c0_4 = arith.constant 0 : index
      %10 = vector.load %arg3[%9, %c0_4] : memref<8x128xf32, #tpu.memory_space<vmem>>, vector<1x128xf32>
      tpu.vector_store %arg3[%9, %c0_4], %8 {strides = array<i32>} : memref<8x128xf32, #tpu.memory_space<vmem>>, vector<1x128xf32>,
    }
    %c8_i32_1 = arith.constant 8 : i32
    return
  }
  func.func @transform_0(%arg0: i32, %arg1: memref<16xi32, #tpu.memory_space<smem>>) -> (i32, i32) {
    %c0_i32 = arith.constant 0 : i32
    %c0_i32_0 = arith.constant 0 : i32
    %c0_i32_1 = arith.constant 0 : i32
    return %c0_i32, %c0_i32_0 : i32, i32
  }
  func.func @transform_1(%arg0: i32, %arg1: memref<16xi32, #tpu.memory_space<smem>>) -> (i32, i32) {
    %c0_i32 = arith.constant 0 : i32
    %c0_i32_0 = arith.constant 0 : i32
    return %arg0, %c0_i32 : i32, i32
  }
}

</mosaic_0001>

<llo_original>
// kernel: tpu_custom_call.1
$region0: #{tpu_custom_call.1}
  #allocation0 [shape = 'u32[]', space=smem, size = 0x4, offset = 0x4, fixed_abs, tag = 'smem constant byte address 0x4 - core index']
  #allocation1 [shape = 'u32[144,128]{1,0:T(1,128)}', space=vmem, size = 0x12000, scoped, tag = 'internal scratch']
  #allocation2 [shape = 's32[1]{0}', space=sflag, size = 0x4, scoped, tag = 'scoped memory for tpu_custom_call.1']
  #allocation3 [shape = 'u8[512]{0}', space=smem, size = 0x200, scoped, tag = 'prefetched SMEM operand 0']
  %s0 = inlined_call_operand.hbm [shape: s32[16], index: 0, kind: input, shape index: {}]
  %s1 = inlined_call_operand.hbm [shape: f32[64,128], index: 1, kind: input, shape index: {}]
  %s2 = inlined_call_operand.hbm [shape: f32[16,128], index: 2, kind: output, shape index: {}]
  %s3 = sld [smem:[#allocation0]]
  $region48: #{tpu_custom_call.1} parent=0
    _
  %s5 = ssub.s32 1, %s3
  %s6 = scalar_select 0, %s5, %s3
  %8 = dma.hbm_to_smem %s0, 16, [#allocation3], [#allocation2]
  %9 = dma.done [#allocation2], 16
  %10 = sfence
  $region1: #{tpu_custom_call.1} parent=0
    #allocation4 [shape = 'u8[32768]{0}', space=vmem, size = 0x8000, scoped, tag = 'input window, operand 1, single buffered']
    #allocation5 [shape = 's32[2]{0}', space=sflag, size = 0x8, scoped, tag = 'scoped memory for tpu_custom_call.1']
    #allocation6 [shape = 's32[2]{0}', space=sflag, size = 0x8, scoped, tag = 'scoped memory for tpu_custom_call.1']
    #allocation7 [shape = 'u8[8192]{0}', space=vmem, size = 0x2000, scoped, tag = 'output window, operand 0']
    %11 = vsyncpa [#allocation5], 0
    %12 = vsyncpa [#allocation6], 0
    %s13 = scalar_lea.sflag [#allocation6], 1
    %14 = vsyncpa %s13, 0
    loop: start=0, step=1, limit=4
    $region2: #{tpu_custom_call.1} parent=1 // loop_pre_header
      _
    $region3: #{tpu_custom_call.1} parent=1 // loop_header
      %s16 = sphi 0, %s20
      %p17 = scmp.ge.s32.totalorder %s16, 4
      %s24 = sphi 0, %s24
      %s26 = sphi 0, %s24
      %s27 = sphi 0, %s26
      %s41 = sphi 0, %s27
      %s47 = sphi 0, %s49
      %s50 = sphi 0, %s47
      %s51 = sphi 0, %s50
      %s67 = sphi 0, %s51
    $region4: #{tpu_custom_call.1} parent=1 // loop_header_branch
      %19 = sbr.rel (%p17) target = $region8
    $region5: #{tpu_custom_call.1} parent=1 // loop_body
      %s21 = ssub.s32 %s16, 1
      %s22 = ssub.s32 %s16, 2
      %s23 = sadd.s32 %s16, 1
      %s25 = sadd.s32 %s24, 1
      %p28 = scmp.eq.s32.totalorder %s16, 1
      %p29 = scmp.ne.s32.totalorder %s24, %s26
      %p30 = scmp.eq.s32.totalorder %s16, 0
      %p31 = por %p29, %p30
      %p32 = scmp.ne.s32.totalorder %s24, %s26
      %p33 = scmp.eq.s32.totalorder %s21, 1
      %p34 = por %p32, %p33
      %p35 = scmp.ne.s32.totalorder %s26, %s27
      %p36 = scmp.eq.s32.totalorder %s21, 0
      %p37 = por %p35, %p36
      %p38 = scmp.ne.s32.totalorder %s26, %s27
      %p39 = scmp.eq.s32.totalorder %s22, 1
      %p40 = por %p38, %p39
      %p42 = scmp.ne.s32.totalorder %s27, %s41
      %p43 = scmp.eq.s32.totalorder %s22, 0
      %p44 = por %p42, %p43
      %s45 = ssub.s32 %s16, %s23
      %p46 = scmp.eq.s32.totalorder %s45, 0
      %s48 = sadd.s32 %s47, 1
      %s49 = scalar_select %p46, %s47, %s48
      %p52 = pneg %p46
      %p53 = scmp.eq.s32.totalorder %s16, 1
      %p54 = por %p52, %p53
      %p55 = scmp.ne.s32.totalorder %s47, %s50
      %p56 = scmp.eq.s32.totalorder %s16, 0
      %p57 = por %p55, %p56
      %p58 = scmp.ne.s32.totalorder %s47, %s50
      %p59 = scmp.eq.s32.totalorder %s21, 1
      %p60 = por %p58, %p59
      %p61 = scmp.ne.s32.totalorder %s50, %s51
      %p62 = scmp.eq.s32.totalorder %s21, 0
      %p63 = por %p61, %p62
      %p64 = scmp.ne.s32.totalorder %s50, %s51
      %p65 = scmp.eq.s32.totalorder %s22, 1
      %p66 = por %p64, %p65
      %p68 = scmp.ne.s32.totalorder %s51, %s67
      %p69 = scmp.eq.s32.totalorder %s22, 0
      %p70 = por %p68, %p69
      %p71 = scmp.le.s32.totalorder 1, %s16
      %p72 = scmp.lt.s32.totalorder %s16, 3
      %p73 = pnand %p71, %p72
      %p74 = pneg %p73
      // Predicated region
      $region9: #{tpu_custom_call.1} parent=5 // pred_check
        _
      $region10: #{tpu_custom_call.1} parent=5 // pred_check_branch
        %76 = sbr.rel (%p73) target = $region12
      $region11: #{tpu_custom_call.1} parent=5 // pred_region
        %s77 = ssub.s32 %s16, 1
        // Predicated region
        $region13: #{tpu_custom_call.1} parent=11 // pred_check
          %p78 = pneg %p37
        $region14: #{tpu_custom_call.1} parent=11 // pred_check_branch
          %80 = sbr.rel (%p78) target = $region16
        $region15: #{tpu_custom_call.1} parent=11 // pred_region
          %s82 = ssub.s32 1024, 1024
          %83 = vsyncadd [#allocation5], %s82
          %s84 = sshll.u32 [#allocation4], 4
          %s85 = int_to_ptr.vmem [resolvable:$true] %s84
          %90 = dma.hbm_to_vmem [thread:$0]  %s1, 1024, %s85, [#allocation5], 128, 128, 8
        $region16: #{tpu_custom_call.1} parent=11 // pred_fallthru
          _
      $region12: #{tpu_custom_call.1} parent=5 // pred_fallthru
        _
      %p91 = scmp.lt.s32.totalorder %s16, 2
      // Predicated region
      $region17: #{tpu_custom_call.1} parent=5 // pred_check
        %p92 = pneg %p91
      $region18: #{tpu_custom_call.1} parent=5 // pred_check_branch
        %94 = sbr.rel (%p92) target = $region20
      $region19: #{tpu_custom_call.1} parent=5 // pred_region
        _
      $region20: #{tpu_custom_call.1} parent=5 // pred_fallthru
        _
      %p95 = scmp.le.s32.totalorder 1, %s16
      %p96 = scmp.lt.s32.totalorder %s16, 3
      %p97 = pnand %p95, %p96
      %p98 = pneg %p97
      // Predicated region
      $region21: #{tpu_custom_call.1} parent=5 // pred_check
        _
      $region22: #{tpu_custom_call.1} parent=5 // pred_check_branch
        %100 = sbr.rel (%p97) target = $region24
      $region23: #{tpu_custom_call.1} parent=5 // pred_region
        %s101 = ssub.s32 %s16, 1
        // Predicated region
        $region25: #{tpu_custom_call.1} parent=23 // pred_check
          %p102 = pneg %p37
        $region26: #{tpu_custom_call.1} parent=23 // pred_check_branch
          %104 = sbr.rel (%p102) target = $region28
        $region27: #{tpu_custom_call.1} parent=23 // pred_region
          %105 = dma.done [#allocation5], 1024
        $region28: #{tpu_custom_call.1} parent=23 // pred_fallthru
          _
        %p106 = pneg %p37
        %p107 = pneg %p34
        %p108 = pneg %p63
        %p109 = pneg %p60
        %s110 = sand.u32 %s50, 1
        %s111 = scalar_lea.sflag [#allocation6], %s110
        %s112 = sand.u32 %s50, 1
        %s113 = smul.addr %s112, 8
        %s114 = scalar_lea.vmem [#allocation7], %s113
        %s115 = smul.u32 %s21, 8
        loop: start=0, step=1, limit=8
        $region29: #{tpu_custom_call.1} parent=23 // loop_pre_header
          _
        $region30: #{tpu_custom_call.1} parent=23 // loop_header
          %s117 = sphi 0, %s121
          %p118 = scmp.ge.s32.totalorder %s117, 8
        $region31: #{tpu_custom_call.1} parent=23 // loop_header_branch
          %120 = sbr.rel (%p118) target = $region35
        $region32: #{tpu_custom_call.1} parent=23 // loop_body
          %s122 = sadd.s32 %s115, %s117
          %s123 = sld [smem:[#allocation3 + %s122]]
          %s124 = scalar_lea.vmem [#allocation4], %s123
          %v125 = vld [vmem:[%s124] sm:$0x1]
          %s126 = scalar_lea.vmem %s114, %s117 [#allocation7]
          %127 = vst [vmem:[%s126] sm:$0x1] %v125
        $region33: #{tpu_custom_call.1} parent=23 // loop_footer
          %s121 = sadd.s32 1, %s117
        $region34: #{tpu_custom_call.1} parent=23 // loop_footer_branch
          %116 = sbr.rel target = $region30
        $region35: #{tpu_custom_call.1} parent=23 // loop_exit
          _
        %s128 = sand.u32 %s50, 1
        %s129 = scalar_lea.sflag [#allocation6], %s128
        %s130 = sand.u32 %s50, 1
        %s131 = smul.addr %s130, 8
        %s132 = scalar_lea.vmem [#allocation7], %s131
        // Predicated region
        $region36: #{tpu_custom_call.1} parent=23 // pred_check
          %p133 = pneg %p60
        $region37: #{tpu_custom_call.1} parent=23 // pred_check_branch
          %135 = sbr.rel (%p133) target = $region39
        $region38: #{tpu_custom_call.1} parent=23 // pred_region
          %s137 = ssub.s32 128, 128
          %138 = vsyncadd %s129, %s137
          %s139 = smul.addr %s21, 128
          %s140 = scalar_lea.hbm %s2, %s139
          %s142 = sshll.u32 %s132, 4
          %s143 = int_to_ptr.vmem [resolvable:$true] %s142
          %145 = dma.vmem_to_hbm [thread:$0]  %s143, 128, %s140, %s129
        $region39: #{tpu_custom_call.1} parent=23 // pred_fallthru
          _
      $region24: #{tpu_custom_call.1} parent=5 // pred_fallthru
        _
      %p146 = scmp.le.s32.totalorder 2, %s16
      // Predicated region
      $region40: #{tpu_custom_call.1} parent=5 // pred_check
        %p147 = pneg %p146
      $region41: #{tpu_custom_call.1} parent=5 // pred_check_branch
        %149 = sbr.rel (%p147) target = $region43
      $region42: #{tpu_custom_call.1} parent=5 // pred_region
        %s150 = ssub.s32 %s16, 2
        // Predicated region
        $region44: #{tpu_custom_call.1} parent=42 // pred_check
          %p151 = pneg %p66
        $region45: #{tpu_custom_call.1} parent=42 // pred_check_branch
          %153 = sbr.rel (%p151) target = $region47
        $region46: #{tpu_custom_call.1} parent=42 // pred_region
          %s154 = sand.u32 %s51, 1
          %s155 = scalar_lea.sflag [#allocation6], %s154
          %s156 = sand.u32 %s51, 1
          %s157 = smul.addr %s156, 8
          %s158 = scalar_lea.vmem [#allocation7], %s157
          %159 = dma.done %s155, 128
        $region47: #{tpu_custom_call.1} parent=42 // pred_fallthru
          _
      $region43: #{tpu_custom_call.1} parent=5 // pred_fallthru
        _
    $region6: #{tpu_custom_call.1} parent=1 // loop_footer
      %s20 = sadd.s32 1, %s16
    $region7: #{tpu_custom_call.1} parent=1 // loop_footer_branch
      %15 = sbr.rel target = $region3
    $region8: #{tpu_custom_call.1} parent=1 // loop_exit
      _
    %160 = vsyncpa [#allocation5], 1
    %s161 = scalar_lea.sflag [#allocation5], 1
    %162 = vsyncpa %s161, 1
    %163 = vsyncpa [#allocation6], 1
    %s164 = scalar_lea.sflag [#allocation6], 1
    %165 = vsyncpa %s164, 1

</llo_original>
